<compile_context>
chip_gen: v6e
topology: v6e:2x2x1
jax: 0.10.0
libtpu: 0.0.40
codegen_flags: <defaults>
</compile_context>

<pallas_src>
import functools

import jax
import jax.numpy as jnp
from jax.experimental import pallas as pl
from jax.experimental.pallas import tpu as pltpu

_EPSILON = 1e-05
_LANES = 128             # lane width
_SUBLANES = 8            # f32 sublanes per vreg
_MAX_BLOCK_ROWS = 4096   # 4096*128*4B = 2 MiB per f32 input block
_NUM_CORE_SPLIT = 2      # leading "parallel" grid axis (v7x: 2 TensorCores)


def _cdiv(a, b):
    return -(-a // b)


def _esr_kernel(o_ref, t_ref, sd_ref, st_ref, *, bm, bpc, rows, need_mask):
    """Accumulate (8,128) partial sums of (t-o)^2 and t^2 for one core split."""
    c = pl.program_id(0)   # core-split index ("parallel")
    i = pl.program_id(1)   # block index within the split ("arbitrary")

    @pl.when(i == 0)
    def _():
        sd_ref[...] = jnp.zeros_like(sd_ref)
        st_ref[...] = jnp.zeros_like(st_ref)

    t = t_ref[...].astype(jnp.float32)
    o = o_ref[...].astype(jnp.float32)

    if need_mask:
        # Zero rows past the real data: the partial last block, or a block that
        # lies entirely past the end when the 2-way split is uneven (its data
        # was clamped to the last real block by the index_map).
        block_idx = c * bpc + i
        row0 = block_idx * bm
        row_ids = row0 + jax.lax.broadcasted_iota(jnp.int32, (bm, _LANES), 0)
        valid = row_ids < rows
        zero = jnp.float32(0.0)
        t = jnp.where(valid, t, zero)
        o = jnp.where(valid, o, zero)

    d = t - o
    # Pure-VPU accumulation: split the sublane-major dim into vreg groups and
    # add them; the scalar (XLU) reduction happens once, in the wrapper.
    sd_ref[...] += jnp.sum((d * d).reshape(bm // _SUBLANES, _SUBLANES, _LANES), axis=0)
    st_ref[...] += jnp.sum((t * t).reshape(bm // _SUBLANES, _SUBLANES, _LANES), axis=0)


def esr_loss(output, target, *, max_block_rows=_MAX_BLOCK_ROWS):
    """Pallas-TPU ESR loss: mean((t-o)^2) / (mean(t^2) + eps). float32 scalar."""
    assert output.shape == target.shape, "output/target shape mismatch"
    n = int(output.size)

    o_flat = output.reshape(-1)
    t_flat = target.reshape(-1)

    # Pad (zeros) only up to a multiple of 8*128 so the (rows, 128) view has a
    # legal (8,128)-tiled layout; zero copies when n is already a multiple of
    # 1024, and no dtype cast here (the kernel casts per block).
    chunk = _SUBLANES * _LANES
    pad = (-n) % chunk
    if pad:
        o_flat = jnp.pad(o_flat, (0, pad))
        t_flat = jnp.pad(t_flat, (0, pad))
    rows = (n + pad) // _LANES
    o2d = o_flat.reshape(rows, _LANES)
    t2d = t_flat.reshape(rows, _LANES)

    bm = min(max_block_rows, rows)              # rows % 8 == 0, so bm % 8 == 0
    total_blocks = _cdiv(rows, bm)
    bpc = _cdiv(total_blocks, _NUM_CORE_SPLIT)  # blocks per core split
    last_block = total_blocks - 1
    need_mask = (rows % bm != 0) or (bpc * _NUM_CORE_SPLIT != total_blocks)

    def in_map(c, i):
        # Clamp so we never DMA a block past the array; masked in-kernel.
        return (jnp.minimum(c * bpc + i, last_block), 0)

    kernel = functools.partial(
        _esr_kernel, bm=bm, bpc=bpc, rows=rows, need_mask=need_mask)

    sd_part, st_part = pl.pallas_call(
        kernel,
        out_shape=[
            jax.ShapeDtypeStruct((_NUM_CORE_SPLIT, _SUBLANES, _LANES), jnp.float32),
            jax.ShapeDtypeStruct((_NUM_CORE_SPLIT, _SUBLANES, _LANES), jnp.float32),
        ],
        grid_spec=pltpu.PrefetchScalarGridSpec(
            num_scalar_prefetch=0,
            grid=(_NUM_CORE_SPLIT, bpc),
            in_specs=[
                pl.BlockSpec((bm, _LANES), in_map),
                pl.BlockSpec((bm, _LANES), in_map),
            ],
            out_specs=[
                pl.BlockSpec((None, _SUBLANES, _LANES), lambda c, i: (c, 0, 0)),
                pl.BlockSpec((None, _SUBLANES, _LANES), lambda c, i: (c, 0, 0)),
            ],
        ),
        compiler_params=pltpu.CompilerParams(
            dimension_semantics=("parallel", "arbitrary"),
        ),
    )(o2d, t2d)

    # Tiny epilogue: single reduction over 2x(8,128) partials + final divide.
    sum_diff = jnp.sum(sd_part)
    sum_tgt = jnp.sum(st_part)
    inv_n = jnp.float32(1.0 / n)
    return (sum_diff * inv_n) / (sum_tgt * inv_n + jnp.float32(_EPSILON))


def _esr_ref(output, target):
    t = target.astype(jnp.float32)
    o = output.astype(jnp.float32)
    return jnp.mean((t - o) ** 2) / (jnp.mean(t * t) + _EPSILON)


if __name__ == "__main__":
    key = jax.random.PRNGKey(0)
    k1, k2, k3, k4 = jax.random.split(key, 4)

    # Main case: NCHW-style tensor, element count a multiple of 1024 (no pad).
    x_shape = (2, 4, 16, 16)
    output = jax.random.normal(k1, x_shape, dtype=jnp.float32)
    target = jax.random.normal(k2, x_shape, dtype=jnp.float32)
    loss = jax.block_until_ready(esr_loss(output, target))
    ref = jax.block_until_ready(_esr_ref(output, target))
    assert jnp.allclose(loss, ref, rtol=1e-5, atol=1e-6), (loss, ref)

    # Ragged case: exercises the minimal zero-pad + in-kernel tail masking path.
    y_shape = (3, 5, 7, 11)
    output2 = jax.random.normal(k3, y_shape, dtype=jnp.float32)
    target2 = jax.random.normal(k4, y_shape, dtype=jnp.float32)
    loss2 = jax.block_until_ready(esr_loss(output2, target2))
    ref2 = jax.block_until_ready(_esr_ref(output2, target2))
    assert jnp.allclose(loss2, ref2, rtol=1e-5, atol=1e-6), (loss2, ref2)

    print("KERNEL_OK")
</pallas_src>

<mosaic_0001>
module attributes {stable_mosaic.version = 11 : i64} {
  func.func @_esr_kernel(%arg0: i32, %arg1: i32, %arg2: memref<16x128xf32, #tpu.memory_space<vmem>>, %arg3: memref<16x128xf32, #tpu.memory_space<vmem>>, %arg4: memref<1x8x128xf32, #tpu.memory_space<vmem>>, %arg5: memref<1x8x128xf32, #tpu.memory_space<vmem>>) attributes {dimension_semantics = [#tpu.dimension_semantics<parallel>, #tpu.dimension_semantics<arbitrary>], iteration_bounds = array<i64: 2, 1>, scalar_prefetch = 0 : i64, scratch_operands = 0 : i64, tpu.core_type = #tpu.core_type<tc>, window_params = [{transform_indices = @transform_0, window_bounds = array<i64: 16, 128>}, {transform_indices = @transform_1, window_bounds = array<i64: 16, 128>}, {transform_indices = @transform_2, window_bounds = array<i64: 1, 8, 128>}, {transform_indices = @transform_3, window_bounds = array<i64: 1, 8, 128>}]} {
    %c0_i32 = arith.constant 0 : i32
    %0 = arith.cmpi eq, %arg1, %c0_i32 : i32
    %1 = arith.extui %0 : i1 to i32
    %c0_i32_0 = arith.constant 0 : i32
    %2 = arith.cmpi ne, %1, %c0_i32_0 : i32
    scf.if %2 {
      %cst_20 = arith.constant 0.000000e+00 : f32
      %36 = vector.broadcast %cst_20 : f32 to vector<8x128xf32>
      %c0_21 = arith.constant 0 : index
      %c0_22 = arith.constant 0 : index
      %c0_23 = arith.constant 0 : index
      %37 = vector.load %arg4[%c0_21, %c0_22, %c0_23] : memref<1x8x128xf32, #tpu.memory_space<vmem>>, vector<1x8x128xf32>
      %38 = vector.shape_cast %37 : vector<1x8x128xf32> to vector<8x128xf32>
      %39 = vector.shape_cast %36 : vector<8x128xf32> to vector<1x8x128xf32>
      tpu.vector_store %arg4[%c0_21, %c0_22, %c0_23], %39 {strides = array<i32>} : memref<1x8x128xf32, #tpu.memory_space<vmem>>, vector<1x8x128xf32>,
      %cst_24 = arith.constant 0.000000e+00 : f32
      %40 = vector.broadcast %cst_24 : f32 to vector<8x128xf32>
      %c0_25 = arith.constant 0 : index
      %c0_26 = arith.constant 0 : index
      %c0_27 = arith.constant 0 : index
      %41 = vector.load %arg5[%c0_25, %c0_26, %c0_27] : memref<1x8x128xf32, #tpu.memory_space<vmem>>, vector<1x8x128xf32>
      %42 = vector.shape_cast %41 : vector<1x8x128xf32> to vector<8x128xf32>
      %43 = vector.shape_cast %40 : vector<8x128xf32> to vector<1x8x128xf32>
      tpu.vector_store %arg5[%c0_25, %c0_26, %c0_27], %43 {strides = array<i32>} : memref<1x8x128xf32, #tpu.memory_space<vmem>>, vector<1x8x128xf32>,
    } else {
    }
    %c0 = arith.constant 0 : index
    %c0_1 = arith.constant 0 : index
    %3 = vector.load %arg3[%c0, %c0_1] : memref<16x128xf32, #tpu.memory_space<vmem>>, vector<16x128xf32>
    %c0_2 = arith.constant 0 : index
    %c0_3 = arith.constant 0 : index
    %4 = vector.load %arg2[%c0_2, %c0_3] : memref<16x128xf32, #tpu.memory_space<vmem>>, vector<16x128xf32>
    %c1_i32 = arith.constant 1 : i32
    %5 = arith.muli %arg0, %c1_i32 : i32
    %6 = arith.addi %5, %arg1 : i32
    %c16_i32 = arith.constant 16 : i32
    %7 = arith.muli %6, %c16_i32 : i32
    %8 = tpu.iota {dimensions = array<i32: 0>} : vector<16x128xi32>
    %9 = vector.broadcast %7 : i32 to vector<16x128xi32>
    %10 = arith.addi %9, %8 : vector<16x128xi32>
    %c16_i32_4 = arith.constant 16 : i32
    %11 = vector.broadcast %c16_i32_4 : i32 to vector<16x128xi32>
    %12 = arith.cmpi slt, %10, %11 : vector<16x128xi32>
    %cst = arith.constant 0.000000e+00 : f32
    %13 = vector.broadcast %cst : f32 to vector<16x128xf32>
    %14 = arith.select %12, %3, %13 : vector<16x128xi1>, vector<16x128xf32>
    %cst_5 = arith.constant 0.000000e+00 : f32
    %15 = vector.broadcast %cst_5 : f32 to vector<16x128xf32>
    %16 = arith.select %12, %4, %15 : vector<16x128xi1>, vector<16x128xf32>
    %17 = arith.subf %14, %16 : vector<16x128xf32>
    %c0_6 = arith.constant 0 : index
    %c0_7 = arith.constant 0 : index
    %c0_8 = arith.constant 0 : index
    %18 = vector.load %arg4[%c0_6, %c0_7, %c0_8] : memref<1x8x128xf32, #tpu.memory_space<vmem>>, vector<1x8x128xf32>
    %19 = vector.shape_cast %18 : vector<1x8x128xf32> to vector<8x128xf32>
    %20 = arith.mulf %17, %17 : vector<16x128xf32>
    %21 = vector.shape_cast %20 : vector<16x128xf32> to vector<2x8x128xf32>
    %cst_9 = arith.constant dense<0.000000e+00> : vector<8x128xf32>
    %22 = vector.multi_reduction <add>, %21, %cst_9 [0] : vector<2x8x128xf32> to vector<8x128xf32>
    %23 = arith.addf %19, %22 : vector<8x128xf32>
    %c0_10 = arith.constant 0 : index
    %c0_11 = arith.constant 0 : index
    %c0_12 = arith.constant 0 : index
    %24 = vector.load %arg4[%c0_10, %c0_11, %c0_12] : memref<1x8x128xf32, #tpu.memory_space<vmem>>, vector<1x8x128xf32>
    %25 = vector.shape_cast %24 : vector<1x8x128xf32> to vector<8x128xf32>
    %26 = vector.shape_cast %23 : vector<8x128xf32> to vector<1x8x128xf32>
    tpu.vector_store %arg4[%c0_10, %c0_11, %c0_12], %26 {strides = array<i32>} : memref<1x8x128xf32, #tpu.memory_space<vmem>>, vector<1x8x128xf32>,
    %c0_13 = arith.constant 0 : index
    %c0_14 = arith.constant 0 : index
    %c0_15 = arith.constant 0 : index
    %27 = vector.load %arg5[%c0_13, %c0_14, %c0_15] : memref<1x8x128xf32, #tpu.memory_space<vmem>>, vector<1x8x128xf32>
    %28 = vector.shape_cast %27 : vector<1x8x128xf32> to vector<8x128xf32>
    %29 = arith.mulf %14, %14 : vector<16x128xf32>
    %30 = vector.shape_cast %29 : vector<16x128xf32> to vector<2x8x128xf32>
    %cst_16 = arith.constant dense<0.000000e+00> : vector<8x128xf32>
    %31 = vector.multi_reduction <add>, %30, %cst_16 [0] : vector<2x8x128xf32> to vector<8x128xf32>
    %32 = arith.addf %28, %31 : vector<8x128xf32>
    %c0_17 = arith.constant 0 : index
    %c0_18 = arith.constant 0 : index
    %c0_19 = arith.constant 0 : index
    %33 = vector.load %arg5[%c0_17, %c0_18, %c0_19] : memref<1x8x128xf32, #tpu.memory_space<vmem>>, vector<1x8x128xf32>
    %34 = vector.shape_cast %33 : vector<1x8x128xf32> to vector<8x128xf32>
    %35 = vector.shape_cast %32 : vector<8x128xf32> to vector<1x8x128xf32>
    tpu.vector_store %arg5[%c0_17, %c0_18, %c0_19], %35 {strides = array<i32>} : memref<1x8x128xf32, #tpu.memory_space<vmem>>, vector<1x8x128xf32>,
    return
  }
  func.func @transform_0(%arg0: i32, %arg1: i32) -> (i32, i32) {
    %c1_i32 = arith.constant 1 : i32
    %0 = arith.muli %arg0, %c1_i32 : i32
    %1 = arith.addi %0, %arg1 : i32
    %c0_i32 = arith.constant 0 : i32
    %2 = arith.minsi %1, %c0_i32 : i32
    %c0_i32_0 = arith.constant 0 : i32
    %c0_i32_1 = arith.constant 0 : i32
    return %2, %c0_i32_0 : i32, i32
  }
  func.func @transform_1(%arg0: i32, %arg1: i32) -> (i32, i32) {
    %c1_i32 = arith.constant 1 : i32
    %0 = arith.muli %arg0, %c1_i32 : i32
    %1 = arith.addi %0, %arg1 : i32
    %c0_i32 = arith.constant 0 : i32
    %2 = arith.minsi %1, %c0_i32 : i32
    %c0_i32_0 = arith.constant 0 : i32
    %c0_i32_1 = arith.constant 0 : i32
    return %2, %c0_i32_0 : i32, i32
  }
  func.func @transform_2(%arg0: i32, %arg1: i32) -> (i32, i32, i32) {
    %c0_i32 = arith.constant 0 : i32
    %c0_i32_0 = arith.constant 0 : i32
    %c0_i32_1 = arith.constant 0 : i32
    return %arg0, %c0_i32, %c0_i32_0 : i32, i32, i32
  }
  func.func @transform_3(%arg0: i32, %arg1: i32) -> (i32, i32, i32) {
    %c0_i32 = arith.constant 0 : i32
    %c0_i32_0 = arith.constant 0 : i32
    %c0_i32_1 = arith.constant 0 : i32
    return %arg0, %c0_i32, %c0_i32_0 : i32, i32, i32
  }
}

</mosaic_0001>

<llo_original>
// kernel: tpu_custom_call.1
$region0: #{tpu_custom_call.1}
  #allocation0 [shape = 'u32[]', space=smem, size = 0x4, offset = 0x4, fixed_abs, tag = 'smem constant byte address 0x4 - core index']
  #allocation1 [shape = 'u32[144,128]{1,0:T(1,128)}', space=vmem, size = 0x12000, scoped, tag = 'internal scratch']
  %s0 = inlined_call_operand.hbm [shape: f32[16,128], index: 0, kind: input, shape index: {}]
  %s1 = inlined_call_operand.hbm [shape: f32[16,128], index: 1, kind: input, shape index: {}]
  %s2 = inlined_call_operand.hbm [shape: f32[2,8,128], index: 2, kind: output, shape index: {0}]
  %s3 = inlined_call_operand.hbm [shape: f32[2,8,128], index: 3, kind: output, shape index: {1}]
  %4 = xla_tuple %s2, %s3
  %s5 = sld [smem:[#allocation0]]
  $region61: #{tpu_custom_call.1} parent=0
    _
  %s7 = ssub.s32 1, %s5
  %s8 = scalar_select 0, %s7, %s5
  $region1: #{tpu_custom_call.1} parent=0
    #allocation2 [shape = 'u8[16384]{0}', space=vmem, size = 0x4000, scoped, tag = 'input window, operand 0']
    #allocation3 [shape = 's32[2]{0}', space=sflag, size = 0x8, scoped, tag = 'scoped memory for tpu_custom_call.1']
    #allocation4 [shape = 's32[2]{0}', space=sflag, size = 0x8, scoped, tag = 'scoped memory for tpu_custom_call.1']
    #allocation5 [shape = 'u8[16384]{0}', space=vmem, size = 0x4000, scoped, tag = 'input window, operand 1']
    #allocation6 [shape = 's32[2]{0}', space=sflag, size = 0x8, scoped, tag = 'scoped memory for tpu_custom_call.1']
    #allocation7 [shape = 'u8[8192]{0}', space=vmem, size = 0x2000, scoped, tag = 'output window, operand 0']
    #allocation8 [shape = 'u8[8192]{0}', space=vmem, size = 0x2000, scoped, tag = 'output window, operand 1']
    #allocation9 [shape = 's32[2]{0}', space=sflag, size = 0x8, scoped, tag = 'scoped memory for tpu_custom_call.1']
    %9 = vsyncpa [#allocation3], 0
    %s10 = scalar_lea.sflag [#allocation3], 1
    %11 = vsyncpa %s10, 0
    %12 = vsyncpa [#allocation6], 0
    %s13 = scalar_lea.sflag [#allocation6], 1
    %14 = vsyncpa %s13, 0
    %15 = vsyncpa [#allocation4], 0
    %s16 = scalar_lea.sflag [#allocation4], 1
    %17 = vsyncpa %s16, 0
    %18 = vsyncpa [#allocation9], 0
    %s19 = scalar_lea.sflag [#allocation9], 1
    %20 = vsyncpa %s19, 0
    loop: start=0, step=1, limit=4
    $region2: #{tpu_custom_call.1} parent=1 // loop_pre_header
      _
    $region3: #{tpu_custom_call.1} parent=1 // loop_header
      %s22 = sphi 0, %s26
      %p23 = scmp.ge.s32.totalorder %s22, 4
      %s29 = sphi 0, %s41
      %s30 = sphi 0, %s37
      %s31 = sphi 0, %s29
      %s32 = sphi 0, %s30
      %s33 = sphi 0, %s31
      %s34 = sphi 0, %s32
      %s50 = sphi 0, %s52
      %s53 = sphi 0, %s50
      %s54 = sphi 0, %s53
      %s70 = sphi 0, %s54
      %s82 = sphi 0, %s84
      %s85 = sphi 0, %s82
      %s86 = sphi 0, %s85
      %s102 = sphi 0, %s86
      %s108 = sphi 0, %s110
      %s111 = sphi 0, %s108
      %s112 = sphi 0, %s111
      %s128 = sphi 0, %s112
      %s134 = sphi 0, %s136
      %s137 = sphi 0, %s134
      %s138 = sphi 0, %s137
      %s154 = sphi 0, %s138
    $region4: #{tpu_custom_call.1} parent=1 // loop_header_branch
      %25 = sbr.rel (%p23) target = $region8
    $region5: #{tpu_custom_call.1} parent=1 // loop_body
      %s27 = ssub.s32 %s22, 1
      %s28 = ssub.s32 %s22, 2
      %s35 = sadd.s32 1, %s30
      %p36 = scmp.ge.s32.totalorder %s35, 1
      %s37 = scalar_select %p36, 0, %s35
      %s38 = sadd.s32 1, %s29
      %s39 = scalar_select %p36, %s38, %s29
      %p40 = scmp.ge.s32.totalorder %s39, 2
      %s41 = scalar_select %p40, 0, %s39
      %s42 = sadd.s32 %s29, %s30
      %p43 = scmp.lt.s32.totalorder %s42, 0
      %s44 = scalar_select %p43, %s42, 0
      %s45 = sadd.s32 %s41, %s37
      %p46 = scmp.lt.s32.totalorder %s45, 0
      %s47 = scalar_select %p46, %s45, 0
      %s48 = ssub.s32 %s44, %s47
      %p49 = scmp.eq.s32.totalorder %s48, 0
      %s51 = sadd.s32 %s50, 1
      %s52 = scalar_select %p49, %s50, %s51
      %p55 = pneg %p49
      %p56 = scmp.eq.s32.totalorder %s22, 1
      %p57 = por %p55, %p56
      %p58 = scmp.ne.s32.totalorder %s50, %s53
      %p59 = scmp.eq.s32.totalorder %s22, 0
      %p60 = por %p58, %p59
      %p61 = scmp.ne.s32.totalorder %s50, %s53
      %p62 = scmp.eq.s32.totalorder %s27, 1
      %p63 = por %p61, %p62
      %p64 = scmp.ne.s32.totalorder %s53, %s54
      %p65 = scmp.eq.s32.totalorder %s27, 0
      %p66 = por %p64, %p65
      %p67 = scmp.ne.s32.totalorder %s53, %s54
      %p68 = scmp.eq.s32.totalorder %s28, 1
      %p69 = por %p67, %p68
      %p71 = scmp.ne.s32.totalorder %s54, %s70
      %p72 = scmp.eq.s32.totalorder %s28, 0
      %p73 = por %p71, %p72
      %s74 = sadd.s32 %s29, %s30
      %p75 = scmp.lt.s32.totalorder %s74, 0
      %s76 = scalar_select %p75, %s74, 0
      %s77 = sadd.s32 %s41, %s37
      %p78 = scmp.lt.s32.totalorder %s77, 0
      %s79 = scalar_select %p78, %s77, 0
      %s80 = ssub.s32 %s76, %s79
      %p81 = scmp.eq.s32.totalorder %s80, 0
      %s83 = sadd.s32 %s82, 1
      %s84 = scalar_select %p81, %s82, %s83
      %p87 = pneg %p81
      %p88 = scmp.eq.s32.totalorder %s22, 1
      %p89 = por %p87, %p88
      %p90 = scmp.ne.s32.totalorder %s82, %s85
      %p91 = scmp.eq.s32.totalorder %s22, 0
      %p92 = por %p90, %p91
      %p93 = scmp.ne.s32.totalorder %s82, %s85
      %p94 = scmp.eq.s32.totalorder %s27, 1
      %p95 = por %p93, %p94
      %p96 = scmp.ne.s32.totalorder %s85, %s86
      %p97 = scmp.eq.s32.totalorder %s27, 0
      %p98 = por %p96, %p97
      %p99 = scmp.ne.s32.totalorder %s85, %s86
      %p100 = scmp.eq.s32.totalorder %s28, 1
      %p101 = por %p99, %p100
      %p103 = scmp.ne.s32.totalorder %s86, %s102
      %p104 = scmp.eq.s32.totalorder %s28, 0
      %p105 = por %p103, %p104
      %s106 = ssub.s32 %s29, %s41
      %p107 = scmp.eq.s32.totalorder %s106, 0
      %s109 = sadd.s32 %s108, 1
      %s110 = scalar_select %p107, %s108, %s109
      %p113 = pneg %p107
      %p114 = scmp.eq.s32.totalorder %s22, 1
      %p115 = por %p113, %p114
      %p116 = scmp.ne.s32.totalorder %s108, %s111
      %p117 = scmp.eq.s32.totalorder %s22, 0
      %p118 = por %p116, %p117
      %p119 = scmp.ne.s32.totalorder %s108, %s111
      %p120 = scmp.eq.s32.totalorder %s27, 1
      %p121 = por %p119, %p120
      %p122 = scmp.ne.s32.totalorder %s111, %s112
      %p123 = scmp.eq.s32.totalorder %s27, 0
      %p124 = por %p122, %p123
      %p125 = scmp.ne.s32.totalorder %s111, %s112
      %p126 = scmp.eq.s32.totalorder %s28, 1
      %p127 = por %p125, %p126
      %p129 = scmp.ne.s32.totalorder %s112, %s128
      %p130 = scmp.eq.s32.totalorder %s28, 0
      %p131 = por %p129, %p130
      %s132 = ssub.s32 %s29, %s41
      %p133 = scmp.eq.s32.totalorder %s132, 0
      %s135 = sadd.s32 %s134, 1
      %s136 = scalar_select %p133, %s134, %s135
      %p139 = pneg %p133
      %p140 = scmp.eq.s32.totalorder %s22, 1
      %p141 = por %p139, %p140
      %p142 = scmp.ne.s32.totalorder %s134, %s137
      %p143 = scmp.eq.s32.totalorder %s22, 0
      %p144 = por %p142, %p143
      %p145 = scmp.ne.s32.totalorder %s134, %s137
      %p146 = scmp.eq.s32.totalorder %s27, 1
      %p147 = por %p145, %p146
      %p148 = scmp.ne.s32.totalorder %s137, %s138
      %p149 = scmp.eq.s32.totalorder %s27, 0
      %p150 = por %p148, %p149
      %p151 = scmp.ne.s32.totalorder %s137, %s138
      %p152 = scmp.eq.s32.totalorder %s28, 1
      %p153 = por %p151, %p152
      %p155 = scmp.ne.s32.totalorder %s138, %s154
      %p156 = scmp.eq.s32.totalorder %s28, 0
      %p157 = por %p155, %p156
      %p158 = scmp.le.s32.totalorder 1, %s22
      %p159 = scmp.lt.s32.totalorder %s22, 3
      %p160 = pnand %p158, %p159
      %p161 = pneg %p160
      // Predicated region
      $region9: #{tpu_custom_call.1} parent=5 // pred_check
        _
      $region10: #{tpu_custom_call.1} parent=5 // pred_check_branch
        %163 = sbr.rel (%p160) target = $region12
      $region11: #{tpu_custom_call.1} parent=5 // pred_region
        %s164 = ssub.s32 %s22, 1
      $region12: #{tpu_custom_call.1} parent=5 // pred_fallthru
        _
      %p165 = scmp.lt.s32.totalorder %s22, 2
      // Predicated region
      $region13: #{tpu_custom_call.1} parent=5 // pred_check
        %p166 = pneg %p165
      $region14: #{tpu_custom_call.1} parent=5 // pred_check_branch
        %168 = sbr.rel (%p166) target = $region16
      $region15: #{tpu_custom_call.1} parent=5 // pred_region
        // Predicated region
        $region17: #{tpu_custom_call.1} parent=15 // pred_check
          %p169 = pneg %p60
        $region18: #{tpu_custom_call.1} parent=15 // pred_check_branch
          %171 = sbr.rel (%p169) target = $region20
        $region19: #{tpu_custom_call.1} parent=15 // pred_region
          %s172 = sand.u32 %s50, 1
          %s173 = scalar_lea.sflag [#allocation3], %s172
          %s174 = sand.u32 %s50, 1
          %s175 = smul.addr %s174, 16
          %s176 = scalar_lea.vmem [#allocation2], %s175
          %s177 = sadd.s32 %s29, %s30
          %p178 = scmp.lt.s32.totalorder %s177, 0
          %s179 = scalar_select %p178, %s177, 0
          %s180 = smul.u32 2, %s179
          %s182 = ssub.s32 256, 256
          %183 = vsyncadd %s173, %s182
          %s184 = smul.addr %s180, 128
          %s185 = scalar_lea.hbm %s0, %s184
          %s186 = sshll.u32 %s176, 4
          %s187 = int_to_ptr.vmem [resolvable:$true] %s186
          %192 = dma.hbm_to_vmem [thread:$0]  %s185, 256, %s187, %s173, 128, 128, 8
        $region20: #{tpu_custom_call.1} parent=15 // pred_fallthru
          _
        // Predicated region
        $region21: #{tpu_custom_call.1} parent=15 // pred_check
          %p193 = pneg %p92
        $region22: #{tpu_custom_call.1} parent=15 // pred_check_branch
          %195 = sbr.rel (%p193) target = $region24
        $region23: #{tpu_custom_call.1} parent=15 // pred_region
          %s196 = sand.u32 %s82, 1
          %s197 = scalar_lea.sflag [#allocation6], %s196
          %s198 = sand.u32 %s82, 1
          %s199 = smul.addr %s198, 16
          %s200 = scalar_lea.vmem [#allocation5], %s199
          %s201 = sadd.s32 %s29, %s30
          %p202 = scmp.lt.s32.totalorder %s201, 0
          %s203 = scalar_select %p202, %s201, 0
          %s204 = smul.u32 2, %s203
          %s206 = ssub.s32 256, 256
          %207 = vsyncadd %s197, %s206
          %s208 = smul.addr %s204, 128
          %s209 = scalar_lea.hbm %s1, %s208
          %s210 = sshll.u32 %s200, 4
          %s211 = int_to_ptr.vmem [resolvable:$true] %s210
          %216 = dma.hbm_to_vmem [thread:$0]  %s209, 256, %s211, %s197, 128, 128, 8
        $region24: #{tpu_custom_call.1} parent=15 // pred_fallthru
          _
      $region16: #{tpu_custom_call.1} parent=5 // pred_fallthru
        _
      %p217 = scmp.le.s32.totalorder 1, %s22
      %p218 = scmp.lt.s32.totalorder %s22, 3
      %p219 = pnand %p217, %p218
      %p220 = pneg %p219
      // Predicated region
      $region25: #{tpu_custom_call.1} parent=5 // pred_check
        _
      $region26: #{tpu_custom_call.1} parent=5 // pred_check_branch
        %222 = sbr.rel (%p219) target = $region28
      $region27: #{tpu_custom_call.1} parent=5 // pred_region
        %s223 = ssub.s32 %s22, 1
        %s224 = sand.u32 %s53, 1
        %s225 = scalar_lea.sflag [#allocation3], %s224
        %s226 = sand.u32 %s53, 1
        %s227 = smul.addr %s226, 16
        %s228 = scalar_lea.vmem [#allocation2], %s227
        // Predicated region
        $region29: #{tpu_custom_call.1} parent=27 // pred_check
          %p229 = pneg %p66
        $region30: #{tpu_custom_call.1} parent=27 // pred_check_branch
          %231 = sbr.rel (%p229) target = $region32
        $region31: #{tpu_custom_call.1} parent=27 // pred_region
          %232 = dma.done %s225, 256
        $region32: #{tpu_custom_call.1} parent=27 // pred_fallthru
          _
        %s233 = sand.u32 %s85, 1
        %s234 = scalar_lea.sflag [#allocation6], %s233
        %s235 = sand.u32 %s85, 1
        %s236 = smul.addr %s235, 16
        %s237 = scalar_lea.vmem [#allocation5], %s236
        // Predicated region
        $region33: #{tpu_custom_call.1} parent=27 // pred_check
          %p238 = pneg %p98
        $region34: #{tpu_custom_call.1} parent=27 // pred_check_branch
          %240 = sbr.rel (%p238) target = $region36
        $region35: #{tpu_custom_call.1} parent=27 // pred_region
          %241 = dma.done %s234, 256
        $region36: #{tpu_custom_call.1} parent=27 // pred_fallthru
          _
        %s242 = sand.u32 %s53, 1
        %s243 = scalar_lea.sflag [#allocation3], %s242
        %s244 = sand.u32 %s53, 1
        %s245 = smul.addr %s244, 16
        %s246 = scalar_lea.vmem [#allocation2], %s245
        %p247 = pneg %p66
        %p248 = pneg %p63
        %s249 = sand.u32 %s85, 1
        %s250 = scalar_lea.sflag [#allocation6], %s249
        %s251 = sand.u32 %s85, 1
        %s252 = smul.addr %s251, 16
        %s253 = scalar_lea.vmem [#allocation5], %s252
        %p254 = pneg %p98
        %p255 = pneg %p95
        %p256 = pneg %p124
        %p257 = pneg %p121
        %s258 = sand.u32 %s111, 1
        %s259 = scalar_lea.sflag [#allocation4], %s258
        %s260 = sand.u32 %s111, 1
        %s261 = smul.addr %s260, 8
        %s262 = scalar_lea.vmem [#allocation7], %s261
        %p263 = pneg %p150
        %p264 = pneg %p147
        %s265 = sand.u32 %s137, 1
        %s266 = scalar_lea.sflag [#allocation9], %s265
        %s267 = sand.u32 %s137, 1
        %s268 = smul.addr %s267, 8
        %s269 = scalar_lea.vmem [#allocation8], %s268
        %s270 = sadd.s32 %s31, %s32
        %p271 = scmp.lt.s32.totalorder %s270, 0
        %s272 = scalar_select %p271, %s270, 0
        %s273 = smul.u32 2, %s272
        %s274 = sadd.s32 %s31, %s32
        %p275 = scmp.lt.s32.totalorder %s274, 0
        %s276 = scalar_select %p275, %s274, 0
        %s277 = smul.u32 2, %s276
        %p278 = scmp.eq.s32.totalorder %s32, 0
        // Predicated region
        $region37: #{tpu_custom_call.1} parent=27 // pred_check
          %p279 = pneg %p278
        $region38: #{tpu_custom_call.1} parent=27 // pred_check_branch
          %281 = sbr.rel (%p279) target = $region40
        $region39: #{tpu_custom_call.1} parent=27 // pred_region
          %282 = vst [vmem:[%s262] sm:$0xff] 0.0
          %283 = vst [vmem:[%s269] sm:$0xff] 0.0
        $region40: #{tpu_custom_call.1} parent=27 // pred_fallthru
          _
        %v284 = vld [vmem:[%s237] sm:$0xff]
        %v285 = vld [vmem:[%s237 + $0x8] sm:$0xff]
        %v286 = vld [vmem:[%s228] sm:$0xff]
        %v287 = vld [vmem:[%s228 + $0x8] sm:$0xff]
        %s288 = sadd.s32 %s31, %s32
        %s289 = smul.u32 %s288, 16
        %v290 = vlaneseq
        %v291 = vshrl.u32 %v290, 7
        %v292 = vadd.s32 %v291, 8
        %v293 = vstv %s289
        %v294 = vadd.s32 %v293, %v291
        %v295 = vadd.s32 %v293, %v292
        %vm296 = vcmp.lt.s32.totalorder %v294, 16
        %vm297 = vcmp.lt.s32.totalorder %v295, 16
        %v298 = vsel %vm296, %v284, 0.0
        %v299 = vsel %vm297, %v285, 0.0
        %v300 = vsel %vm296, %v286, 0.0
        %v301 = vsel %vm297, %v287, 0.0
        %v302 = vsub.f32 %v298, %v300
        %v303 = vsub.f32 %v299, %v301
        %v304 = vld [vmem:[%s262] sm:$0xff]
        %v305 = vmul.f32 %v302, %v302
        %v306 = vmul.f32 %v303, %v303
        %v307 = vadd.f32 %v305, %v306
        %v308 = vadd.f32 %v304, %v307
        %309 = vst [vmem:[%s262] sm:$0xff] %v308
        %v310 = vld [vmem:[%s269] sm:$0xff]
        %v311 = vmul.f32 %v298, %v298
        %v312 = vmul.f32 %v299, %v299
        %v313 = vadd.f32 %v311, %v312
        %v314 = vadd.f32 %v310, %v313
        %315 = vst [vmem:[%s269] sm:$0xff] %v314
        %s316 = sand.u32 %s111, 1
        %s317 = scalar_lea.sflag [#allocation4], %s316
        %s318 = sand.u32 %s111, 1
        %s319 = smul.addr %s318, 8
        %s320 = scalar_lea.vmem [#allocation7], %s319
        %s321 = sand.u32 %s137, 1
        %s322 = scalar_lea.sflag [#allocation9], %s321
        %s323 = sand.u32 %s137, 1
        %s324 = smul.addr %s323, 8
        %s325 = scalar_lea.vmem [#allocation8], %s324
        // Predicated region
        $region41: #{tpu_custom_call.1} parent=27 // pred_check
          %p326 = pneg %p121
        $region42: #{tpu_custom_call.1} parent=27 // pred_check_branch
          %328 = sbr.rel (%p326) target = $region44
        $region43: #{tpu_custom_call.1} parent=27 // pred_region
          %s330 = ssub.s32 128, 128
          %331 = vsyncadd %s317, %s330
          %s332 = smul.addr %s31, 128
          %s333 = scalar_lea.hbm %s2, %s332
          %s335 = sshll.u32 %s320, 4
          %s336 = int_to_ptr.vmem [resolvable:$true] %s335
          %338 = dma.vmem_to_hbm [thread:$0]  %s336, 128, %s333, %s317
        $region44: #{tpu_custom_call.1} parent=27 // pred_fallthru
          _
        // Predicated region
        $region45: #{tpu_custom_call.1} parent=27 // pred_check
          %p339 = pneg %p147
        $region46: #{tpu_custom_call.1} parent=27 // pred_check_branch
          %341 = sbr.rel (%p339) target = $region48
        $region47: #{tpu_custom_call.1} parent=27 // pred_region
          %s343 = ssub.s32 128, 128
          %344 = vsyncadd %s322, %s343
          %s345 = smul.addr %s31, 128
          %s346 = scalar_lea.hbm %s3, %s345
          %s348 = sshll.u32 %s325, 4
          %s349 = int_to_ptr.vmem [resolvable:$true] %s348
          %351 = dma.vmem_to_hbm [thread:$0]  %s349, 128, %s346, %s322
        $region48: #{tpu_custom_call.1} parent=27 // pred_fallthru
          _
      $region28: #{tpu_custom_call.1} parent=5 // pred_fallthru
        _
      %p352 = scmp.le.s32.totalorder 2, %s22
      // Predicated region
      $region49: #{tpu_custom_call.1} parent=5 // pred_check
        %p353 = pneg %p352
      $region50: #{tpu_custom_call.1} parent=5 // pred_check_branch
        %355 = sbr.rel (%p353) target = $region52
      $region51: #{tpu_custom_call.1} parent=5 // pred_region
        %s356 = ssub.s32 %s22, 2
        // Predicated region
        $region53: #{tpu_custom_call.1} parent=51 // pred_check
          %p357 = pneg %p127
        $region54: #{tpu_custom_call.1} parent=51 // pred_check_branch
          %359 = sbr.rel (%p357) target = $region56
        $region55: #{tpu_custom_call.1} parent=51 // pred_region
          %s360 = sand.u32 %s112, 1
          %s361 = scalar_lea.sflag [#allocation4], %s360
          %s362 = sand.u32 %s112, 1
          %s363 = smul.addr %s362, 8
          %s364 = scalar_lea.vmem [#allocation7], %s363
          %365 = dma.done %s361, 128
        $region56: #{tpu_custom_call.1} parent=51 // pred_fallthru
          _
        // Predicated region
        $region57: #{tpu_custom_call.1} parent=51 // pred_check
          %p366 = pneg %p153
        $region58: #{tpu_custom_call.1} parent=51 // pred_check_branch
          %368 = sbr.rel (%p366) target = $region60
        $region59: #{tpu_custom_call.1} parent=51 // pred_region
          %s369 = sand.u32 %s138, 1
          %s370 = scalar_lea.sflag [#allocation9], %s369
          %s371 = sand.u32 %s138, 1
          %s372 = smul.addr %s371, 8
          %s373 = scalar_lea.vmem [#allocation8], %s372
          %374 = dma.done %s370, 128
        $region60: #{tpu_custom_call.1} parent=51 // pred_fallthru
          _
      $region52: #{tpu_custom_call.1} parent=5 // pred_fallthru
        _
    $region6: #{tpu_custom_call.1} parent=1 // loop_footer
      %s26 = sadd.s32 1, %s22
    $region7: #{tpu_custom_call.1} parent=1 // loop_footer_branch
      %21 = sbr.rel target = $region3
    $region8: #{tpu_custom_call.1} parent=1 // loop_exit
      _
    %375 = vsyncpa [#allocation3], 1
    %s376 = scalar_lea.sflag [#allocation3], 1
    %377 = vsyncpa %s376, 1
    %378 = vsyncpa [#allocation6], 1
    %s379 = scalar_lea.sflag [#allocation6], 1
    %380 = vsyncpa %s379, 1
    %381 = vsyncpa [#allocation4], 1
    %s382 = scalar_lea.sflag [#allocation4], 1
    %383 = vsyncpa %s382, 1
    %384 = vsyncpa [#allocation9], 1
    %s385 = scalar_lea.sflag [#allocation9], 1
    %386 = vsyncpa %s385, 1

</llo_original>
